<compile_context>
chip_gen: v7x
topology: tpu7x:2x2x1
jax: 0.10.0
libtpu: 0.0.40
codegen_flags: <defaults>
</compile_context>

<pallas_src>
import functools

import jax
import jax.numpy as jnp
from jax import lax
from jax.experimental import pallas as pl
from jax.experimental.pallas import tpu as pltpu

EPS = 1e-5
DIM_H = 256                 # hidden width fixed by the module
LANE = 128
SUBLANE = 8
MAX_TB = 2048               # max rows per batch tile
VMEM_LIMIT = 32 * 1024 * 1024


def _round_up(n, m):
    return (n + m - 1) // m * m


# --------------------------------------------------------------------------
# Fast path: whole (padded) batch in one tile -> fully fused single kernel.
# --------------------------------------------------------------------------
def _fused_kernel(x_ref, w1_ref, g_ref, be_ref, w3_ref, b3_ref, o_ref, *, inv_b):
    # h is computed exactly once; padded zero rows give zero h rows, so the
    # tile-local sums ARE the full-batch sums (we divide by the real B).
    h = jnp.dot(x_ref[...], w1_ref[...], preferred_element_type=jnp.float32)
    mean = jnp.sum(h, axis=0, keepdims=True) * inv_b                  # (1, 256)
    ex2 = jnp.sum(h * h, axis=0, keepdims=True) * inv_b               # (1, 256)
    var = jnp.maximum(ex2 - mean * mean, 0.0)                         # fp guard
    scale = g_ref[...] * lax.rsqrt(var + EPS)
    shift = be_ref[...] - mean * scale
    hn = jnp.maximum(h * scale + shift, 0.0)
    out = jnp.dot(hn.astype(w3_ref.dtype), w3_ref[...],
                  preferred_element_type=jnp.float32) + b3_ref[...]
    o_ref[...] = out.astype(o_ref.dtype)


# --------------------------------------------------------------------------
# Large-batch pass 1: full-batch BN statistics -> folded (scale, shift).
# --------------------------------------------------------------------------
def _stats_kernel(x_ref, w1_ref, g_ref, be_ref,        # inputs
                  scale_ref, shift_ref,                 # outputs (resident)
                  xsum_ref, gram_ref,                   # VMEM scratch
                  *, inv_b):
    i = pl.program_id(0)

    @pl.when(i == 0)
    def _():
        xsum_ref[...] = jnp.zeros_like(xsum_ref)
        gram_ref[...] = jnp.zeros_like(gram_ref)

    xb = x_ref[...]
    xsum_ref[...] += jnp.sum(xb.astype(jnp.float32), axis=0, keepdims=True)
    # Gram accumulation X^T X: bf16/f32 operands straight into the MXU,
    # f32 accumulation.
    gram_ref[...] += lax.dot_general(
        xb, xb, (((0,), (0,)), ((), ())), preferred_element_type=jnp.float32)

    @pl.when(i == pl.num_programs(0) - 1)
    def _():
        w1 = w1_ref[...]                                             # (dim_in, 256) f32
        mean = jnp.dot(xsum_ref[...], w1,
                       preferred_element_type=jnp.float32) * inv_b   # (1, 256)
        ex2 = jnp.sum(
            w1 * jnp.dot(gram_ref[...], w1, preferred_element_type=jnp.float32),
            axis=0, keepdims=True) * inv_b                           # (1, 256)
        var = jnp.maximum(ex2 - mean * mean, 0.0)
        scale = g_ref[...] * lax.rsqrt(var + EPS)
        scale_ref[...] = scale
        shift_ref[...] = be_ref[...] - mean * scale


# --------------------------------------------------------------------------
# Large-batch pass 2: fc1 (no bias) -> folded-BN affine -> ReLU -> fc3 (padded).
# --------------------------------------------------------------------------
def _main_kernel(x_ref, w1_ref, scale_ref, shift_ref, w3_ref, b3_ref, o_ref):
    h = jnp.dot(x_ref[...], w1_ref[...], preferred_element_type=jnp.float32)
    h = jnp.maximum(h * scale_ref[...] + shift_ref[...], 0.0)
    out = jnp.dot(h.astype(w3_ref.dtype), w3_ref[...],
                  preferred_element_type=jnp.float32) + b3_ref[...]
    o_ref[...] = out.astype(o_ref.dtype)


# --------------------------------------------------------------------------
# Wrapper
# --------------------------------------------------------------------------
def pairnet_forward(x, params, *, use_bf16_matmul=False, max_tb=MAX_TB):
    """x: (B, dim_in) float32. params: w1,b1,g1,be1,w3,b3 (b1 unused in-kernel)."""
    B, dim_in = x.shape
    w1, g1, be1 = params["w1"], params["g1"], params["be1"]
    w3, b3 = params["w3"], params["b3"]
    dim_h = w1.shape[1]
    dim_out = w3.shape[1]

    TB = min(max_tb, _round_up(B, SUBLANE))
    Bp = _round_up(B, TB)
    nb = Bp // TB
    dim_out_p = _round_up(dim_out, LANE)

    mm_dtype = jnp.bfloat16 if use_bf16_matmul else jnp.float32
    inv_b = 1.0 / B

    # Zero-pad batch (zeros contribute nothing to sum / Gram / h-sums) and pad
    # the fc3 output feature dim to a lane-dense multiple of 128.
    x_mm = jnp.pad(x.astype(jnp.float32), ((0, Bp - B), (0, 0))).astype(mm_dtype)
    w1_f32 = w1.astype(jnp.float32)
    w1_mm = w1.astype(mm_dtype)
    g1_f = g1.astype(jnp.float32).reshape(1, dim_h)
    be1_f = be1.astype(jnp.float32).reshape(1, dim_h)
    w3_p = jnp.pad(w3.astype(jnp.float32), ((0, 0), (0, dim_out_p - dim_out)))
    w3_mm = w3_p.astype(mm_dtype)
    b3_p = jnp.pad(b3.astype(jnp.float32).reshape(1, -1),
                   ((0, 0), (0, dim_out_p - dim_out)))

    if nb == 1:
        # ---- fully fused single-tile path (one kernel, x read once) ----
        out = pl.pallas_call(
            functools.partial(_fused_kernel, inv_b=inv_b),
            grid=(1,),
            in_specs=[
                pl.BlockSpec((TB, dim_in), lambda i: (0, 0)),        # x
                pl.BlockSpec((dim_in, dim_h), lambda i: (0, 0)),     # W1
                pl.BlockSpec((1, dim_h), lambda i: (0, 0)),          # gamma
                pl.BlockSpec((1, dim_h), lambda i: (0, 0)),          # beta
                pl.BlockSpec((dim_h, dim_out_p), lambda i: (0, 0)),  # W3 padded
                pl.BlockSpec((1, dim_out_p), lambda i: (0, 0)),      # b3 padded
            ],
            out_specs=pl.BlockSpec((TB, dim_out_p), lambda i: (0, 0)),
            out_shape=jax.ShapeDtypeStruct((Bp, dim_out_p), jnp.float32),
            compiler_params=pltpu.CompilerParams(
                dimension_semantics=("arbitrary",),
                vmem_limit_bytes=VMEM_LIMIT,
            ),
        )(x_mm, w1_mm, g1_f, be1_f, w3_mm, b3_p)
        return out[:B, :dim_out]

    # ---- pass 1: full-batch BN stats, folded to (scale, shift) ----
    scale, shift = pl.pallas_call(
        functools.partial(_stats_kernel, inv_b=inv_b),
        grid=(nb,),
        in_specs=[
            pl.BlockSpec((TB, dim_in), lambda i: (i, 0)),        # x tile
            pl.BlockSpec((dim_in, dim_h), lambda i: (0, 0)),     # W1 (resident)
            pl.BlockSpec((1, dim_h), lambda i: (0, 0)),          # gamma
            pl.BlockSpec((1, dim_h), lambda i: (0, 0)),          # beta
        ],
        out_specs=[
            pl.BlockSpec((1, dim_h), lambda i: (0, 0)),          # scale
            pl.BlockSpec((1, dim_h), lambda i: (0, 0)),          # shift
        ],
        out_shape=[
            jax.ShapeDtypeStruct((1, dim_h), jnp.float32),
            jax.ShapeDtypeStruct((1, dim_h), jnp.float32),
        ],
        scratch_shapes=[
            pltpu.VMEM((1, dim_in), jnp.float32),                # running sum(x)
            pltpu.VMEM((dim_in, dim_in), jnp.float32),           # running X^T X
        ],
        compiler_params=pltpu.CompilerParams(
            dimension_semantics=("arbitrary",),                  # accumulates
            vmem_limit_bytes=VMEM_LIMIT,
        ),
    )(x_mm, w1_f32, g1_f, be1_f)

    # ---- pass 2: fused forward over the batch grid ----
    out = pl.pallas_call(
        _main_kernel,
        grid=(nb,),
        in_specs=[
            pl.BlockSpec((TB, dim_in), lambda i: (i, 0)),        # x tile
            pl.BlockSpec((dim_in, dim_h), lambda i: (0, 0)),     # W1 (resident)
            pl.BlockSpec((1, dim_h), lambda i: (0, 0)),          # scale
            pl.BlockSpec((1, dim_h), lambda i: (0, 0)),          # shift
            pl.BlockSpec((dim_h, dim_out_p), lambda i: (0, 0)),  # W3 padded
            pl.BlockSpec((1, dim_out_p), lambda i: (0, 0)),      # b3 padded
        ],
        out_specs=pl.BlockSpec((TB, dim_out_p), lambda i: (i, 0)),
        out_shape=jax.ShapeDtypeStruct((Bp, dim_out_p), jnp.float32),
        compiler_params=pltpu.CompilerParams(
            dimension_semantics=("parallel",),                   # batch tiles independent
            vmem_limit_bytes=VMEM_LIMIT,
        ),
    )(x_mm, w1_mm, scale, shift, w3_mm, b3_p)

    return out[:B, :dim_out]


# --------------------------------------------------------------------------
# Params / reference / test
# --------------------------------------------------------------------------
def init_params(key, dim_in, dim_out):
    """Shapes follow PairNet.__init__ (PyTorch default inits, BN affine perturbed)."""
    ks = jax.random.split(key, 8)

    def lin(kw, kb, fan_in, fan_out):
        bound = 1.0 / jnp.sqrt(fan_in)
        w = jax.random.uniform(kw, (fan_in, fan_out), jnp.float32, -bound, bound)
        b = jax.random.uniform(kb, (1, fan_out), jnp.float32, -bound, bound)
        return w, b

    w1, b1 = lin(ks[0], ks[1], dim_in, DIM_H)
    w3, b3 = lin(ks[2], ks[3], DIM_H, dim_out)
    g1 = 1.0 + 0.1 * jax.random.normal(ks[4], (1, DIM_H), jnp.float32)
    be1 = 0.1 * jax.random.normal(ks[5], (1, DIM_H), jnp.float32)
    return dict(w1=w1, b1=b1, g1=g1, be1=be1, w3=w3, b3=b3)


def pairnet_reference(x, p):
    """Straightforward PyTorch-semantics forward (includes the fc1 bias)."""
    h = x @ p["w1"] + p["b1"]
    m = jnp.mean(h, axis=0, keepdims=True)
    v = jnp.mean((h - m) ** 2, axis=0, keepdims=True)
    h = (h - m) / jnp.sqrt(v + EPS) * p["g1"] + p["be1"]
    h = jnp.maximum(h, 0.0)
    return h @ p["w3"] + p["b3"]


if __name__ == "__main__":
    key = jax.random.PRNGKey(0)
    k_x, k_x2, k_p = jax.random.split(key, 3)

    B, dim_in, dim_out = 8, 32, 16
    x = jax.random.normal(k_x, (B, dim_in), jnp.float32)
    params = init_params(k_p, dim_in, dim_out)
    ref = pairnet_reference(x, params)

    # f32 MXU path, fused single-tile kernel: matches PyTorch f32 semantics.
    out = jax.block_until_ready(pairnet_forward(x, params, use_bf16_matmul=False))
    assert out.shape == (B, dim_out)
    assert jnp.allclose(out, ref, atol=1e-3, rtol=1e-3), "f32 fused mismatch"

    # bf16-at-MXU path (v6e/v7x throughput option); BN math stays f32.
    out_bf16 = jax.block_until_ready(pairnet_forward(x, params, use_bf16_matmul=True))
    assert jnp.allclose(out_bf16, ref, atol=5e-2, rtol=5e-2), "bf16 fused mismatch"

    # Exercise the tiled two-pass (Gram-stats) path with a small tile limit.
    B2 = 160
    x2 = jax.random.normal(k_x2, (B2, dim_in), jnp.float32)
    ref2 = pairnet_reference(x2, params)
    out2 = jax.block_until_ready(
        pairnet_forward(x2, params, use_bf16_matmul=False, max_tb=64))
    assert out2.shape == (B2, dim_out)
    assert jnp.allclose(out2, ref2, atol=2e-3, rtol=2e-3), "f32 tiled mismatch"

    print("KERNEL_OK")
</pallas_src>

<mosaic_0001>
module attributes {stable_mosaic.version = 11 : i64} {
  func.func @_fused_kernel(%arg0: i32, %arg1: memref<8x32xf32, #tpu.memory_space<vmem>>, %arg2: memref<32x256xf32, #tpu.memory_space<vmem>>, %arg3: memref<1x256xf32, #tpu.memory_space<vmem>>, %arg4: memref<1x256xf32, #tpu.memory_space<vmem>>, %arg5: memref<256x128xf32, #tpu.memory_space<vmem>>, %arg6: memref<1x128xf32, #tpu.memory_space<vmem>>, %arg7: memref<8x128xf32, #tpu.memory_space<vmem>>) attributes {dimension_semantics = [#tpu.dimension_semantics<arbitrary>], iteration_bounds = array<i64: 1>, scalar_prefetch = 0 : i64, scratch_operands = 0 : i64, tpu.core_type = #tpu.core_type<tc>, window_params = [{pipeline_mode = #tpu.pipeline_mode<synchronous>, transform_indices = @transform_0, window_bounds = array<i64: 8, 32>}, {pipeline_mode = #tpu.pipeline_mode<synchronous>, transform_indices = @transform_1, window_bounds = array<i64: 32, 256>}, {pipeline_mode = #tpu.pipeline_mode<synchronous>, transform_indices = @transform_2, window_bounds = array<i64: 1, 256>}, {pipeline_mode = #tpu.pipeline_mode<synchronous>, transform_indices = @transform_3, window_bounds = array<i64: 1, 256>}, {pipeline_mode = #tpu.pipeline_mode<synchronous>, transform_indices = @transform_4, window_bounds = array<i64: 256, 128>}, {pipeline_mode = #tpu.pipeline_mode<synchronous>, transform_indices = @transform_5, window_bounds = array<i64: 1, 128>}, {pipeline_mode = #tpu.pipeline_mode<synchronous>, transform_indices = @transform_6, window_bounds = array<i64: 8, 128>}]} {
    %c0 = arith.constant 0 : index
    %c0_0 = arith.constant 0 : index
    %0 = vector.load %arg1[%c0, %c0_0] : memref<8x32xf32, #tpu.memory_space<vmem>>, vector<8x32xf32>
    %c0_1 = arith.constant 0 : index
    %c0_2 = arith.constant 0 : index
    %1 = vector.load %arg2[%c0_1, %c0_2] : memref<32x256xf32, #tpu.memory_space<vmem>>, vector<32x256xf32>
    %cst = arith.constant dense<0.000000e+00> : vector<8x256xf32>
    %2 = tpu.matmul %0, %1, %cst {dimension_numbers = #tpu.dot_dimension_numbers<[1], [0], [0], [1], [0, 0, 1, 1], [], []>} : vector<8x32xf32>, vector<32x256xf32>, vector<8x256xf32> -> vector<8x256xf32>
    %cst_3 = arith.constant dense<0.000000e+00> : vector<256xf32>
    %3 = vector.multi_reduction <add>, %2, %cst_3 [0] : vector<8x256xf32> to vector<256xf32>
    %4 = vector.shape_cast %3 : vector<256xf32> to vector<1x256xf32>
    %cst_4 = arith.constant 1.250000e-01 : f32
    %5 = vector.broadcast %cst_4 : f32 to vector<1x256xf32>
    %6 = arith.mulf %4, %5 : vector<1x256xf32>
    %7 = arith.mulf %2, %2 : vector<8x256xf32>
    %cst_5 = arith.constant dense<0.000000e+00> : vector<256xf32>
    %8 = vector.multi_reduction <add>, %7, %cst_5 [0] : vector<8x256xf32> to vector<256xf32>
    %9 = vector.shape_cast %8 : vector<256xf32> to vector<1x256xf32>
    %cst_6 = arith.constant 1.250000e-01 : f32
    %10 = vector.broadcast %cst_6 : f32 to vector<1x256xf32>
    %11 = arith.mulf %9, %10 : vector<1x256xf32>
    %12 = arith.mulf %6, %6 : vector<1x256xf32>
    %13 = arith.subf %11, %12 : vector<1x256xf32>
    %cst_7 = arith.constant 0.000000e+00 : f32
    %14 = vector.broadcast %cst_7 : f32 to vector<1x256xf32>
    %15 = arith.maximumf %13, %14 : vector<1x256xf32>
    %c0_8 = arith.constant 0 : index
    %c0_9 = arith.constant 0 : index
    %16 = vector.load %arg3[%c0_8, %c0_9] : memref<1x256xf32, #tpu.memory_space<vmem>>, vector<1x256xf32>
    %cst_10 = arith.constant 9.99999974E-6 : f32
    %17 = vector.broadcast %cst_10 : f32 to vector<1x256xf32>
    %18 = arith.addf %15, %17 : vector<1x256xf32>
    %19 = math.rsqrt %18 : vector<1x256xf32>
    %20 = arith.mulf %16, %19 : vector<1x256xf32>
    %c0_11 = arith.constant 0 : index
    %c0_12 = arith.constant 0 : index
    %21 = vector.load %arg4[%c0_11, %c0_12] : memref<1x256xf32, #tpu.memory_space<vmem>>, vector<1x256xf32>
    %22 = arith.mulf %6, %20 : vector<1x256xf32>
    %23 = arith.subf %21, %22 : vector<1x256xf32>
    %24 = vector.broadcast %20 : vector<1x256xf32> to vector<8x256xf32>
    %25 = arith.mulf %2, %24 : vector<8x256xf32>
    %26 = vector.broadcast %23 : vector<1x256xf32> to vector<8x256xf32>
    %27 = arith.addf %25, %26 : vector<8x256xf32>
    %cst_13 = arith.constant 0.000000e+00 : f32
    %28 = vector.broadcast %cst_13 : f32 to vector<8x256xf32>
    %29 = arith.maximumf %27, %28 : vector<8x256xf32>
    %c0_14 = arith.constant 0 : index
    %c0_15 = arith.constant 0 : index
    %30 = vector.load %arg5[%c0_14, %c0_15] : memref<256x128xf32, #tpu.memory_space<vmem>>, vector<256x128xf32>
    %cst_16 = arith.constant dense<0.000000e+00> : vector<8x128xf32>
    %31 = tpu.matmul %29, %30, %cst_16 {dimension_numbers = #tpu.dot_dimension_numbers<[1], [0], [0], [1], [0, 0, 1, 1], [], []>} : vector<8x256xf32>, vector<256x128xf32>, vector<8x128xf32> -> vector<8x128xf32>
    %c0_17 = arith.constant 0 : index
    %c0_18 = arith.constant 0 : index
    %32 = vector.load %arg6[%c0_17, %c0_18] : memref<1x128xf32, #tpu.memory_space<vmem>>, vector<1x128xf32>
    %33 = vector.broadcast %32 : vector<1x128xf32> to vector<8x128xf32>
    %34 = arith.addf %31, %33 : vector<8x128xf32>
    %c0_19 = arith.constant 0 : index
    %c0_20 = arith.constant 0 : index
    %35 = vector.load %arg7[%c0_19, %c0_20] : memref<8x128xf32, #tpu.memory_space<vmem>>, vector<8x128xf32>
    tpu.vector_store %arg7[%c0_19, %c0_20], %34 {strides = array<i32>} : memref<8x128xf32, #tpu.memory_space<vmem>>, vector<8x128xf32>,
    return
  }
  func.func @transform_0(%arg0: i32) -> (i32, i32) {
    %c0_i32 = arith.constant 0 : i32
    %c0_i32_0 = arith.constant 0 : i32
    %c0_i32_1 = arith.constant 0 : i32
    return %c0_i32, %c0_i32_0 : i32, i32
  }
  func.func @transform_1(%arg0: i32) -> (i32, i32) {
    %c0_i32 = arith.constant 0 : i32
    %c0_i32_0 = arith.constant 0 : i32
    %c0_i32_1 = arith.constant 0 : i32
    return %c0_i32, %c0_i32_0 : i32, i32
  }
  func.func @transform_2(%arg0: i32) -> (i32, i32) {
    %c0_i32 = arith.constant 0 : i32
    %c0_i32_0 = arith.constant 0 : i32
    %c0_i32_1 = arith.constant 0 : i32
    return %c0_i32, %c0_i32_0 : i32, i32
  }
  func.func @transform_3(%arg0: i32) -> (i32, i32) {
    %c0_i32 = arith.constant 0 : i32
    %c0_i32_0 = arith.constant 0 : i32
    %c0_i32_1 = arith.constant 0 : i32
    return %c0_i32, %c0_i32_0 : i32, i32
  }
  func.func @transform_4(%arg0: i32) -> (i32, i32) {
    %c0_i32 = arith.constant 0 : i32
    %c0_i32_0 = arith.constant 0 : i32
    %c0_i32_1 = arith.constant 0 : i32
    return %c0_i32, %c0_i32_0 : i32, i32
  }
  func.func @transform_5(%arg0: i32) -> (i32, i32) {
    %c0_i32 = arith.constant 0 : i32
    %c0_i32_0 = arith.constant 0 : i32
    %c0_i32_1 = arith.constant 0 : i32
    return %c0_i32, %c0_i32_0 : i32, i32
  }
  func.func @transform_6(%arg0: i32) -> (i32, i32) {
    %c0_i32 = arith.constant 0 : i32
    %c0_i32_0 = arith.constant 0 : i32
    %c0_i32_1 = arith.constant 0 : i32
    return %c0_i32, %c0_i32_0 : i32, i32
  }
}

</mosaic_0001>

<llo_original>
// kernel: tpu_custom_call.1
$region0: #{tpu_custom_call.1}
  #allocation0 [shape = 'u32[]', space=smem, size = 0x4, offset = 0x4, fixed_abs, tag = 'smem constant byte address 0x4 - core index']
  #allocation1 [shape = 'u32[144,128]{1,0:T(1,128)}', space=vmem, size = 0x12000, scoped, tag = 'internal scratch']
  %s0 = inlined_call_operand.hbm [shape: f32[8,32], index: 0, kind: input, shape index: {}]
  %s1 = inlined_call_operand.hbm [shape: f32[32,256], index: 1, kind: input, shape index: {}]
  %s2 = inlined_call_operand.vmem [shape: f32[1,256], index: 2, kind: input, shape index: {}]
  %s3 = inlined_call_operand.vmem [shape: f32[1,256], index: 3, kind: input, shape index: {}]
  %s4 = inlined_call_operand.hbm [shape: f32[256,128], index: 4, kind: input, shape index: {}]
  %s5 = inlined_call_operand.vmem [shape: f32[1,128], index: 5, kind: input, shape index: {}]
  %s6 = inlined_call_operand.hbm [shape: f32[8,128], index: 6, kind: output, shape index: {}]
  %s7 = sld [smem:[#allocation0]]
  $region46: #{tpu_custom_call.1} parent=0
    _
  %s9 = ssub.s32 1, %s7
  %s10 = scalar_select 0, %s9, %s7
  $region1: #{tpu_custom_call.1} parent=0
    #allocation2 [shape = 'u8[4096]{0}', space=vmem, size = 0x1000, scoped, tag = 'input window, operand 0, single buffered']
    #allocation3 [shape = 's32[1]{0}', space=sflag, size = 0x4, scoped, tag = 'scoped memory for tpu_custom_call.1']
    #allocation4 [shape = 's32[1]{0}', space=sflag, size = 0x4, scoped, tag = 'scoped memory for tpu_custom_call.1']
    #allocation5 [shape = 'u8[32768]{0}', space=vmem, size = 0x8000, scoped, tag = 'input window, operand 1, single buffered']
    #allocation6 [shape = 's32[1]{0}', space=sflag, size = 0x4, scoped, tag = 'scoped memory for tpu_custom_call.1']
    #allocation7 [shape = 'u8[131072]{0}', space=vmem, size = 0x20000, scoped, tag = 'input window, operand 4, single buffered']
    #allocation8 [shape = 'u8[4096]{0}', space=vmem, size = 0x1000, scoped, tag = 'output window, operand 0, single buffered']
    %11 = vsyncpa [#allocation3], 0
    %12 = vsyncpa [#allocation6], 0
    %13 = vsyncpa [#allocation4], 0
    // Predicated region
    $region2: #{tpu_custom_call.1} parent=1 // pred_check
      _
    $region3: #{tpu_custom_call.1} parent=1 // pred_check_branch
      %15 = sbr.rel (0) target = $region5
    $region4: #{tpu_custom_call.1} parent=1 // pred_region
      %s17 = ssub.s32 128, 128
      %18 = vsyncadd [#allocation3], %s17
      %s20 = sshll.u32 [#allocation2], 4
      %s21 = int_to_ptr.vmem [resolvable:$true] %s20
      %23 = dma.hbm_to_vmem [thread:$0]  %s0, 128, %s21, [#allocation3]
    $region5: #{tpu_custom_call.1} parent=1 // pred_fallthru
      _
    // Predicated region
    $region6: #{tpu_custom_call.1} parent=1 // pred_check
      _
    $region7: #{tpu_custom_call.1} parent=1 // pred_check_branch
      %25 = sbr.rel (0) target = $region9
    $region8: #{tpu_custom_call.1} parent=1 // pred_region
      %s27 = ssub.s32 1024, 1024
      %28 = vsyncadd [#allocation6], %s27
      %s29 = sshll.u32 [#allocation5], 4
      %s30 = int_to_ptr.vmem [resolvable:$true] %s29
      %35 = dma.hbm_to_vmem [thread:$0]  %s1, 1024, %s30, [#allocation6], 256, 256, 16
    $region9: #{tpu_custom_call.1} parent=1 // pred_fallthru
      _
    // Predicated region
    $region10: #{tpu_custom_call.1} parent=1 // pred_check
      _
    $region11: #{tpu_custom_call.1} parent=1 // pred_check_branch
      %37 = sbr.rel (0) target = $region13
    $region12: #{tpu_custom_call.1} parent=1 // pred_region
      _
    $region13: #{tpu_custom_call.1} parent=1 // pred_fallthru
      _
    // Predicated region
    $region14: #{tpu_custom_call.1} parent=1 // pred_check
      _
    $region15: #{tpu_custom_call.1} parent=1 // pred_check_branch
      %39 = sbr.rel (0) target = $region17
    $region16: #{tpu_custom_call.1} parent=1 // pred_region
      _
    $region17: #{tpu_custom_call.1} parent=1 // pred_fallthru
      _
    // Predicated region
    $region18: #{tpu_custom_call.1} parent=1 // pred_check
      _
    $region19: #{tpu_custom_call.1} parent=1 // pred_check_branch
      %41 = sbr.rel (0) target = $region21
    $region20: #{tpu_custom_call.1} parent=1 // pred_region
      %s43 = ssub.s32 4096, 4096
      %44 = vsyncadd [#allocation6], %s43
      %s45 = sshll.u32 [#allocation7], 4
      %s46 = int_to_ptr.vmem [resolvable:$true] %s45
      %51 = dma.hbm_to_vmem [thread:$0]  %s4, 4096, %s46, [#allocation6], 128, 128, 8
    $region21: #{tpu_custom_call.1} parent=1 // pred_fallthru
      _
    // Predicated region
    $region22: #{tpu_custom_call.1} parent=1 // pred_check
      _
    $region23: #{tpu_custom_call.1} parent=1 // pred_check_branch
      %53 = sbr.rel (0) target = $region25
    $region24: #{tpu_custom_call.1} parent=1 // pred_region
      _
    $region25: #{tpu_custom_call.1} parent=1 // pred_fallthru
      _
    // Predicated region
    $region26: #{tpu_custom_call.1} parent=1 // pred_check
      _
    $region27: #{tpu_custom_call.1} parent=1 // pred_check_branch
      %55 = sbr.rel (0) target = $region29
    $region28: #{tpu_custom_call.1} parent=1 // pred_region
      %56 = dma.done [#allocation3], 128
    $region29: #{tpu_custom_call.1} parent=1 // pred_fallthru
      _
    // Predicated region
    $region30: #{tpu_custom_call.1} parent=1 // pred_check
      _
    $region31: #{tpu_custom_call.1} parent=1 // pred_check_branch
      %58 = sbr.rel (0) target = $region33
    $region32: #{tpu_custom_call.1} parent=1 // pred_region
      %59 = dma.done [#allocation6], 1024
    $region33: #{tpu_custom_call.1} parent=1 // pred_fallthru
      _
    // Predicated region
    $region34: #{tpu_custom_call.1} parent=1 // pred_check
      _
    $region35: #{tpu_custom_call.1} parent=1 // pred_check_branch
      %61 = sbr.rel (0) target = $region37
    $region36: #{tpu_custom_call.1} parent=1 // pred_region
      %62 = dma.done [#allocation6], 4096
    $region37: #{tpu_custom_call.1} parent=1 // pred_fallthru
      _
    %v63 = vld [vmem:[#allocation2] sm:$0xff]
    %v64 = vld [vmem:[#allocation5] sm:$0xff]
    %v65 = vld [vmem:[#allocation5 + $0x8] sm:$0xff]
    %v66 = vld [vmem:[#allocation5 + $0x10] sm:$0xff]
    %v67 = vld [vmem:[#allocation5 + $0x18] sm:$0xff]
    %v68 = vld [vmem:[#allocation5 + $0x20] sm:$0xff]
    %v69 = vld [vmem:[#allocation5 + $0x28] sm:$0xff]
    %v70 = vld [vmem:[#allocation5 + $0x30] sm:$0xff]
    %v71 = vld [vmem:[#allocation5 + $0x38] sm:$0xff]
    %vm72 = vcmask 261120
    %v74 = vsel %vm72, %v63, 0
    %76 = vmatprep.subr.mxu0 %v65
    %77 = vmatpush1.msra.mxu0 %v64
    %78 = vmatprep.subr.mxu0 %v67
    %79 = vmatpush1.msra.mxu0 %v66
    %80 = vmatprep.subr.mxu0 %v69
    %81 = vmatpush1.msra.mxu0 %v68
    %82 = vmatprep.subr.mxu0 %v71
    %83 = vmatpush1.msra.mxu0 %v70
    %84 = vmatprep.subr.mxu0 0.0
    %85 = vmatpush1.msra.mxu0 0.0
    %86 = vmatprep.subr.mxu0 0.0
    %87 = vmatpush1.msra.mxu0 0.0
    %88 = vmatprep.subr.mxu0 0.0
    %89 = vmatpush1.msra.mxu0 0.0
    %90 = vmatprep.subr.mxu0 0.0
    %91 = vmatpush1.msra.mxu0 0.0
    %92 = vmatprep.subr.mxu0 0.0
    %93 = vmatpush1.msra.mxu0 0.0
    %94 = vmatprep.subr.mxu0 0.0
    %95 = vmatpush1.msra.mxu0 0.0
    %96 = vmatprep.subr.mxu0 0.0
    %97 = vmatpush1.msra.mxu0 0.0
    %98 = vmatprep.subr.mxu0 0.0
    %99 = vmatpush1.msra.mxu0 0.0
    %100 = vmatprep.subr.mxu0 0.0
    %101 = vmatpush1.msra.mxu0 0.0
    %102 = vmatprep.subr.mxu0 0.0
    %103 = vmatpush1.msra.mxu0 0.0
    %104 = vmatprep.subr.mxu0 0.0
    %105 = vmatpush1.msra.mxu0 0.0
    %106 = vmatprep.subr.mxu0 0.0
    %107 = vmatpush1.msra.mxu0 0.0
    %108 = vmatprep.subr.mxu0 0.0
    %109 = vmatpush1.msra.mxu0 0.0
    %110 = vmatprep.subr.mxu0 0.0
    %111 = vmatpush1.msra.mxu0 0.0
    %112 = vmatprep.subr.mxu0 0.0
    %113 = vmatpush1.msra.mxu0 0.0
    %114 = vmatprep.subr.mxu0 0.0
    %115 = vmatpush1.msra.mxu0 0.0
    %116 = vmatprep.subr.mxu0 0.0
    %117 = vmatpush1.msra.mxu0 0.0
    %118 = vmatprep.subr.mxu0 0.0
    %119 = vmatpush1.msra.mxu0 0.0
    %120 = vmatprep.subr.mxu0 0.0
    %121 = vmatpush1.msra.mxu0 0.0
    %122 = vmatprep.subr.mxu0 0.0
    %123 = vmatpush1.msra.mxu0 0.0
    %124 = vmatprep.subr.mxu0 0.0
    %125 = vmatpush1.msra.mxu0 0.0
    %126 = vmatprep.subr.mxu0 0.0
    %127 = vmatpush1.msra.mxu0 0.0
    %128 = vmatprep.subr.mxu0 0.0
    %129 = vmatpush1.msra.mxu0 0.0
    %130 = vmatprep.subr.mxu0 0.0
    %131 = vmatpush1.msra.mxu0 0.0
    %132 = vmatprep.subr.mxu0 0.0
    %133 = vmatpush1.msra.mxu0 0.0
    %134 = vmatprep.subr.mxu0 0.0
    %135 = vmatpush1.msra.mxu0 0.0
    %136 = vmatprep.subr.mxu0 0.0
    %137 = vmatpush1.msra.mxu0 0.0
    %138 = vmatprep.subr.mxu0 0.0
    %139 = vmatpush1.msra.mxu0 0.0
    %140 = vmatprep.mubr.f32.mxu0 0.0
    %141 = vmatmul.mubr.f32.gmra.mrb[0].mxu0 %v74
    %v142 = vpop.f32.mrb[0].mxu0
    %v143 = vadd.f32 0.0, %v142
    %v144 = vpop.f32.mrb[0].mxu0
    %v145 = vadd.f32 0.0, %v144
    %146 = vdwg.mxu0
    %v147 = vrot.slane %v143, 4
    %v148 = vadd.f32 %v143, %v147
    %v149 = vrot.slane %v148, 2
    %v150 = vadd.f32 %v148, %v149
    %v151 = vrot.slane %v150, 1
    %v152 = vadd.f32 %v150, %v151
    %v153 = vrot.slane %v145, 4
    %v154 = vadd.f32 %v145, %v153
    %v155 = vrot.slane %v154, 2
    %v156 = vadd.f32 %v154, %v155
    %v157 = vrot.slane %v156, 1
    %v158 = vadd.f32 %v156, %v157
    %v159 = vmul.f32 %v152, 0.125
    %v160 = vmul.f32 %v158, 0.125
    %v161 = vmul.f32 %v143, %v143
    %v162 = vmul.f32 %v145, %v145
    %v163 = vrot.slane %v161, 4
    %v164 = vadd.f32 %v161, %v163
    %v165 = vrot.slane %v164, 2
    %v166 = vadd.f32 %v164, %v165
    %v167 = vrot.slane %v166, 1
    %v168 = vadd.f32 %v166, %v167
    %v169 = vrot.slane %v162, 4
    %v170 = vadd.f32 %v162, %v169
    %v171 = vrot.slane %v170, 2
    %v172 = vadd.f32 %v170, %v171
    %v173 = vrot.slane %v172, 1
    %v174 = vadd.f32 %v172, %v173
    %v175 = vmul.f32 %v168, 0.125
    %v176 = vmul.f32 %v174, 0.125
    %v177 = vmul.f32 %v159, %v159
    %v178 = vmul.f32 %v160, %v160
    %v179 = vsub.f32 %v175, %v177
    %v180 = vsub.f32 %v176, %v178
    %v181 = vmax.f32 %v179, 0.0
    %v182 = vmax.f32 %v180, 0.0
    %v183 = vld [vmem:[%s2] sm:$0x3]
    %v184 = vadd.f32 %v181, 1e-05
    %v185 = vadd.f32 %v182, 1e-05
    %v186 = vrsqrt.pop %v184
    %v187 = vrsqrt.pop %v185
    %v190 = vcombine.low %v186, %v187
    %v192 = vunpack.c.l.s4 1966171168
    %v193 = vunpack.c.0.s8 %v192
    %v194 = vlaneseq
    %v195 = vshrl.u32 %v194, 7
    %v196 = vsub.s32 %v193, %v195
    %v197 = vrot.slane %v190, %v196
    %v199 = vunpack.c.l.s4 1966171168
    %v200 = vunpack.c.0.s8 %v199
    %v201 = vlaneseq
    %v202 = vshrl.u32 %v201, 7
    %v203 = vsub.s32 %v200, %v202
    %v204 = vrot.slane %v197, %v203
    %v206 = vmul.f32 %v183, %v204
    %v207 = vld [vmem:[%s3] sm:$0x3]
    %v209 = vlaneseq
    %v210 = vshrl.u32 %v209, 7
    %v211 = vsub.s32 0, %v210
    %v212 = vrot.slane %v206, %v211
    %v213 = vlaneseq
    %v214 = vshrl.u32 %v213, 7
    %v215 = vsub.s32 1, %v214
    %v216 = vrot.slane %v206, %v215
    %v219 = vmul.f32 %v159, %v212
    %v220 = vmul.f32 %v160, %v216
    %v223 = vcombine.low %v219, %v220
    %v225 = vunpack.c.l.s4 1966171168
    %v226 = vunpack.c.0.s8 %v225
    %v227 = vlaneseq
    %v228 = vshrl.u32 %v227, 7
    %v229 = vsub.s32 %v226, %v228
    %v230 = vrot.slane %v223, %v229
    %v232 = vunpack.c.l.s4 1966171168
    %v233 = vunpack.c.0.s8 %v232
    %v234 = vlaneseq
    %v235 = vshrl.u32 %v234, 7
    %v236 = vsub.s32 %v233, %v235
    %v237 = vrot.slane %v230, %v236
    %v239 = vsub.f32 %v207, %v237
    %v240 = vmul.f32 %v143, %v212
    %v241 = vmul.f32 %v145, %v216
    %v243 = vlaneseq
    %v244 = vshrl.u32 %v243, 7
    %v245 = vsub.s32 0, %v244
    %v246 = vrot.slane %v239, %v245
    %v247 = vlaneseq
    %v248 = vshrl.u32 %v247, 7
    %v249 = vsub.s32 1, %v248
    %v250 = vrot.slane %v239, %v249
    %v253 = vadd.f32 %v240, %v246
    %v254 = vadd.f32 %v241, %v250
    %v255 = vmax.f32 %v253, 0.0
    %v256 = vmax.f32 %v254, 0.0
    %v257 = vld [vmem:[#allocation7] sm:$0xff]
    %v258 = vld [vmem:[#allocation7 + $0x8] sm:$0xff]
    %v259 = vld [vmem:[#allocation7 + $0x10] sm:$0xff]
    %v260 = vld [vmem:[#allocation7 + $0x18] sm:$0xff]
    %v261 = vld [vmem:[#allocation7 + $0x20] sm:$0xff]
    %v262 = vld [vmem:[#allocation7 + $0x28] sm:$0xff]
    %v263 = vld [vmem:[#allocation7 + $0x30] sm:$0xff]
    %v264 = vld [vmem:[#allocation7 + $0x38] sm:$0xff]
    %v265 = vld [vmem:[#allocation7 + $0x40] sm:$0xff]
    %v266 = vld [vmem:[#allocation7 + $0x48] sm:$0xff]
    %v267 = vld [vmem:[#allocation7 + $0x50] sm:$0xff]
    %v268 = vld [vmem:[#allocation7 + $0x58] sm:$0xff]
    %v269 = vld [vmem:[#allocation7 + $0x60] sm:$0xff]
    %v270 = vld [vmem:[#allocation7 + $0x68] sm:$0xff]
    %v271 = vld [vmem:[#allocation7 + $0x70] sm:$0xff]
    %v272 = vld [vmem:[#allocation7 + $0x78] sm:$0xff]
    %v273 = vld [vmem:[#allocation7 + $0x80] sm:$0xff]
    %v274 = vld [vmem:[#allocation7 + $0x88] sm:$0xff]
    %v275 = vld [vmem:[#allocation7 + $0x90] sm:$0xff]
    %v276 = vld [vmem:[#allocation7 + $0x98] sm:$0xff]
    %v277 = vld [vmem:[#allocation7 + $0xa0] sm:$0xff]
    %v278 = vld [vmem:[#allocation7 + $0xa8] sm:$0xff]
    %v279 = vld [vmem:[#allocation7 + $0xb0] sm:$0xff]
    %v280 = vld [vmem:[#allocation7 + $0xb8] sm:$0xff]
    %v281 = vld [vmem:[#allocation7 + $0xc0] sm:$0xff]
    %v282 = vld [vmem:[#allocation7 + $0xc8] sm:$0xff]
    %v283 = vld [vmem:[#allocation7 + $0xd0] sm:$0xff]
    %v284 = vld [vmem:[#allocation7 + $0xd8] sm:$0xff]
    %v285 = vld [vmem:[#allocation7 + $0xe0] sm:$0xff]
    %v286 = vld [vmem:[#allocation7 + $0xe8] sm:$0xff]
    %v287 = vld [vmem:[#allocation7 + $0xf0] sm:$0xff]
    %v288 = vld [vmem:[#allocation7 + $0xf8] sm:$0xff]
    %v289 = vld [vmem:[%s5] sm:$0x1]
    %v291 = vlaneseq
    %v292 = vshrl.u32 %v291, 7
    %v293 = vsub.s32 0, %v292
    %v294 = vrot.slane %v289, %v293
    %296 = vmatprep.subr.mxu0 0.0
    %297 = vmatpush1.msra.mxu0 %v257
    %298 = vmatprep.subr.mxu0 0.0
    %299 = vmatpush1.msra.mxu0 %v258
    %300 = vmatprep.subr.mxu0 0.0
    %301 = vmatpush1.msra.mxu0 %v259
    %302 = vmatprep.subr.mxu0 0.0
    %303 = vmatpush1.msra.mxu0 %v260
    %304 = vmatprep.subr.mxu0 0.0
    %305 = vmatpush1.msra.mxu0 %v261
    %306 = vmatprep.subr.mxu0 0.0
    %307 = vmatpush1.msra.mxu0 %v262
    %308 = vmatprep.subr.mxu0 0.0
    %309 = vmatpush1.msra.mxu0 %v263
    %310 = vmatprep.subr.mxu0 0.0
    %311 = vmatpush1.msra.mxu0 %v264
    %312 = vmatprep.subr.mxu0 0.0
    %313 = vmatpush1.msra.mxu0 %v265
    %314 = vmatprep.subr.mxu0 0.0
    %315 = vmatpush1.msra.mxu0 %v266
    %316 = vmatprep.subr.mxu0 0.0
    %317 = vmatpush1.msra.mxu0 %v267
    %318 = vmatprep.subr.mxu0 0.0
    %319 = vmatpush1.msra.mxu0 %v268
    %320 = vmatprep.subr.mxu0 0.0
    %321 = vmatpush1.msra.mxu0 %v269
    %322 = vmatprep.subr.mxu0 0.0
    %323 = vmatpush1.msra.mxu0 %v270
    %324 = vmatprep.subr.mxu0 0.0
    %325 = vmatpush1.msra.mxu0 %v271
    %326 = vmatprep.subr.mxu0 0.0
    %327 = vmatpush1.msra.mxu0 %v272
    %328 = vmatprep.subr.mxu0 0.0
    %329 = vmatpush1.msra.mxu0 %v273
    %330 = vmatprep.subr.mxu0 0.0
    %331 = vmatpush1.msra.mxu0 %v274
    %332 = vmatprep.subr.mxu0 0.0
    %333 = vmatpush1.msra.mxu0 %v275
    %334 = vmatprep.subr.mxu0 0.0
    %335 = vmatpush1.msra.mxu0 %v276
    %336 = vmatprep.subr.mxu0 0.0
    %337 = vmatpush1.msra.mxu0 %v277
    %338 = vmatprep.subr.mxu0 0.0
    %339 = vmatpush1.msra.mxu0 %v278
    %340 = vmatprep.subr.mxu0 0.0
    %341 = vmatpush1.msra.mxu0 %v279
    %342 = vmatprep.subr.mxu0 0.0
    %343 = vmatpush1.msra.mxu0 %v280
    %344 = vmatprep.subr.mxu0 0.0
    %345 = vmatpush1.msra.mxu0 %v281
    %346 = vmatprep.subr.mxu0 0.0
    %347 = vmatpush1.msra.mxu0 %v282
    %348 = vmatprep.subr.mxu0 0.0
    %349 = vmatpush1.msra.mxu0 %v283
    %350 = vmatprep.subr.mxu0 0.0
    %351 = vmatpush1.msra.mxu0 %v284
    %352 = vmatprep.subr.mxu0 0.0
    %353 = vmatpush1.msra.mxu0 %v285
    %354 = vmatprep.subr.mxu0 0.0
    %355 = vmatpush1.msra.mxu0 %v286
    %356 = vmatprep.subr.mxu0 0.0
    %357 = vmatpush1.msra.mxu0 %v287
    %358 = vmatprep.subr.mxu0 0.0
    %359 = vmatpush1.msra.mxu0 %v288
    %360 = vmatprep.mubr.f32.mxu0 %v256
    %361 = vmatmul.mubr.f32.gmra.mrb[0].mxu0 %v255
    %v362 = vpop.f32.mrb[0].mxu0
    %v363 = vadd.f32 %v294, %v362
    %v364 = vpop.f32.mrb[0].mxu0
    %365 = vdwg.mxu0
    %366 = vst [vmem:[#allocation8] sm:$0xff] %v363
    // Predicated region
    $region38: #{tpu_custom_call.1} parent=1 // pred_check
      _
    $region39: #{tpu_custom_call.1} parent=1 // pred_check_branch
      %368 = sbr.rel (0) target = $region41
    $region40: #{tpu_custom_call.1} parent=1 // pred_region
      %s370 = ssub.s32 128, 128
      %371 = vsyncadd [#allocation4], %s370
      %s373 = sshll.u32 [#allocation8], 4
      %s374 = int_to_ptr.vmem [resolvable:$true] %s373
      %376 = dma.vmem_to_hbm [thread:$0]  %s374, 128, %s6, [#allocation4]
    $region41: #{tpu_custom_call.1} parent=1 // pred_fallthru
      _
    // Predicated region
    $region42: #{tpu_custom_call.1} parent=1 // pred_check
      _
    $region43: #{tpu_custom_call.1} parent=1 // pred_check_branch
      %378 = sbr.rel (0) target = $region45
    $region44: #{tpu_custom_call.1} parent=1 // pred_region
      %379 = dma.done [#allocation4], 128
    $region45: #{tpu_custom_call.1} parent=1 // pred_fallthru
      _
    %380 = vsyncpa [#allocation3], 1
    %381 = vsyncpa [#allocation6], 1
    %382 = vsyncpa [#allocation4], 1

</llo_original>
